<compile_context>
chip_gen: v7x
topology: tpu7x:2x2x1
jax: 0.10.0
libtpu: 0.0.40
codegen_flags: <defaults>
</compile_context>

<pallas_src>
import jax
import jax.numpy as jnp
from jax.experimental import pallas as pl
from jax.experimental.pallas import tpu as pltpu


def _probe_kernel(x_ref, w_ref, b_ref, o_ref):
    # x_ref: (BLOCK_B, D) in the input dtype (f32 or bf16)
    # w_ref: (D, 1)       same dtype as x, resident across grid steps
    # b_ref: (1,)         f32 scalar in SMEM
    # o_ref: (BLOCK_B, 1) f32 probabilities
    logits = jnp.dot(x_ref[...], w_ref[...], preferred_element_type=jnp.float32)
    logits = logits + b_ref[0]
    o_ref[...] = jax.nn.sigmoid(logits).astype(o_ref.dtype)


def _round_up(n: int, m: int) -> int:
    return ((n + m - 1) // m) * m


def _pick_block_b(batch: int, feat_dim: int, itemsize: int) -> int:
    # Target <= ~8 MiB per x tile so (2 double-buffered x tiles + resident
    # weight + tiny output) stays well inside the scoped VMEM budget on every
    # generation (v7x: 64 MiB physical / 32 MiB default scope).
    tile_budget_bytes = 8 * 1024 * 1024
    rows = tile_budget_bytes // max(1, feat_dim * itemsize)
    rows = max(8, min(1024, rows))          # sublane floor, 1024-row cap
    rows = (rows // 8) * 8                  # sublane multiple
    rows = min(rows, _round_up(batch, 8))   # never bigger than padded batch
    return max(8, rows)


def probe_forward(x: jax.Array, weight: jax.Array, bias: jax.Array,
                  *, block_b: int | None = None) -> jax.Array:
    """Pallas TPU equivalent of PyTorchProbe.forward.

    Args:
      x:      (B, D) activations (float32 or bfloat16, used as-is).
      weight: (1, D) weight (torch.nn.Linear(input_dim, 1).weight layout).
      bias:   (1,)   bias.

    Returns:
      (B,) float32 probabilities.
    """
    B, D = x.shape
    in_dtype = x.dtype
    itemsize = jnp.dtype(in_dtype).itemsize

    if block_b is None:
        block_b = _pick_block_b(B, D, itemsize)

    b_pad = _round_up(B, block_b)
    if b_pad != B:
        x = jnp.pad(x, ((0, b_pad - B), (0, 0)))     # glue: pad ragged last tile

    w_col = weight.reshape(D, 1).astype(in_dtype)     # (D, 1), matches x dtype
    b_smem = bias.reshape(1).astype(jnp.float32)      # scalar for SMEM

    out = pl.pallas_call(
        _probe_kernel,
        out_shape=jax.ShapeDtypeStruct((b_pad, 1), jnp.float32),
        grid=(b_pad // block_b,),
        in_specs=[
            # x: streamed batch tiles, double-buffered by the Pallas pipeline.
            pl.BlockSpec((block_b, D), lambda i: (i, 0)),
            # weight: constant index_map -> stays resident in VMEM.
            pl.BlockSpec((D, 1), lambda i: (0, 0)),
            # bias: scalar in SMEM (no padded VMEM tile, scalar-path read).
            pl.BlockSpec(memory_space=pltpu.MemorySpace.SMEM),
        ],
        out_specs=pl.BlockSpec((block_b, 1), lambda i: (i, 0)),
        compiler_params=pltpu.CompilerParams(
            # Batch tiles are independent -> shard across v7x's two TensorCores.
            dimension_semantics=("parallel",),
            vmem_limit_bytes=48 * 1024 * 1024,
        ),
    )(x, w_col, b_smem)

    return out[:B, 0]   # drop padding rows + squeeze(-1), glue


if __name__ == "__main__":
    key = jax.random.PRNGKey(0)
    B, D = 8, 32  # small demo shapes: batch_size=8, input_dim=32

    kx, kw, kb, kx2 = jax.random.split(key, 4)
    x = jax.random.normal(kx, (B, D), dtype=jnp.float32)

    # Deterministic init mimicking torch.nn.Linear(input_dim, 1):
    # U(-1/sqrt(D), 1/sqrt(D)) for both weight and bias.
    bound = 1.0 / jnp.sqrt(jnp.float32(D))
    weight = jax.random.uniform(kw, (1, D), minval=-bound, maxval=bound,
                                dtype=jnp.float32)
    bias = jax.random.uniform(kb, (1,), minval=-bound, maxval=bound,
                              dtype=jnp.float32)

    probs = jax.block_until_ready(probe_forward(x, weight, bias))
    ref = jax.nn.sigmoid(
        jnp.dot(x, weight.T, precision=jax.lax.Precision.HIGHEST) + bias
    )[:, 0]
    assert probs.shape == (B,)
    assert jnp.allclose(probs, ref, rtol=1e-5, atol=1e-5), "mismatch vs reference"

    # Exercise the ragged-batch (padded last tile) path as well.
    B2 = 13
    x2 = jax.random.normal(kx2, (B2, D), dtype=jnp.float32)
    probs2 = jax.block_until_ready(probe_forward(x2, weight, bias, block_b=8))
    ref2 = jax.nn.sigmoid(
        jnp.dot(x2, weight.T, precision=jax.lax.Precision.HIGHEST) + bias
    )[:, 0]
    assert probs2.shape == (B2,)
    assert jnp.allclose(probs2, ref2, rtol=1e-5, atol=1e-5), "ragged mismatch"

    print("KERNEL_OK")
</pallas_src>

<mosaic_0001>
module attributes {stable_mosaic.version = 11 : i64} {
  func.func @_probe_kernel(%arg0: i32, %arg1: memref<8x32xf32, #tpu.memory_space<vmem>>, %arg2: memref<32x1xf32, #tpu.memory_space<vmem>>, %arg3: memref<1xf32, #tpu.memory_space<smem>>, %arg4: memref<8x1xf32, #tpu.memory_space<vmem>>) attributes {dimension_semantics = [#tpu.dimension_semantics<parallel>], iteration_bounds = array<i64: 1>, scalar_prefetch = 0 : i64, scratch_operands = 0 : i64, tpu.core_type = #tpu.core_type<tc>, window_params = [{transform_indices = @transform_0, window_bounds = array<i64: 8, 32>}, {pipeline_mode = #tpu.pipeline_mode<synchronous>, transform_indices = @transform_1, window_bounds = array<i64: 32, 1>}, {transform_indices = @transform_2, window_bounds = array<i64: 1>}, {transform_indices = @transform_3, window_bounds = array<i64: 8, 1>}]} {
    %c0 = arith.constant 0 : index
    %c0_0 = arith.constant 0 : index
    %0 = vector.load %arg1[%c0, %c0_0] : memref<8x32xf32, #tpu.memory_space<vmem>>, vector<8x32xf32>
    %c0_1 = arith.constant 0 : index
    %c0_2 = arith.constant 0 : index
    %1 = vector.load %arg2[%c0_1, %c0_2] : memref<32x1xf32, #tpu.memory_space<vmem>>, vector<32x1xf32>
    %cst = arith.constant dense<0.000000e+00> : vector<8x1xf32>
    %2 = tpu.matmul %0, %1, %cst {dimension_numbers = #tpu.dot_dimension_numbers<[1], [0], [0], [1], [0, 0, 1, 1], [], []>} : vector<8x32xf32>, vector<32x1xf32>, vector<8x1xf32> -> vector<8x1xf32>
    %c0_3 = arith.constant 0 : index
    %3 = memref.load %arg3[%c0_3] : memref<1xf32, #tpu.memory_space<smem>>
    %4 = vector.broadcast %3 : f32 to vector<8x1xf32>
    %5 = arith.addf %2, %4 : vector<8x1xf32>
    %6 = arith.negf %5 : vector<8x1xf32>
    %7 = math.exp %6 : vector<8x1xf32>
    %cst_4 = arith.constant 1.000000e+00 : f32
    %8 = vector.broadcast %cst_4 : f32 to vector<8x1xf32>
    %9 = arith.addf %8, %7 : vector<8x1xf32>
    %10 = arith.divf %8, %9 : vector<8x1xf32>
    %c0_5 = arith.constant 0 : index
    %c0_6 = arith.constant 0 : index
    %11 = vector.load %arg4[%c0_5, %c0_6] : memref<8x1xf32, #tpu.memory_space<vmem>>, vector<8x1xf32>
    tpu.vector_store %arg4[%c0_5, %c0_6], %10 {strides = array<i32>} : memref<8x1xf32, #tpu.memory_space<vmem>>, vector<8x1xf32>,
    return
  }
  func.func @transform_0(%arg0: i32) -> (i32, i32) {
    %c0_i32 = arith.constant 0 : i32
    %c0_i32_0 = arith.constant 0 : i32
    return %arg0, %c0_i32 : i32, i32
  }
  func.func @transform_1(%arg0: i32) -> (i32, i32) {
    %c0_i32 = arith.constant 0 : i32
    %c0_i32_0 = arith.constant 0 : i32
    %c0_i32_1 = arith.constant 0 : i32
    return %c0_i32, %c0_i32_0 : i32, i32
  }
  func.func @transform_2(%arg0: i32) -> i32 {
    %c0_i32 = arith.constant 0 : i32
    %c0_i32_0 = arith.constant 0 : i32
    return %c0_i32 : i32
  }
  func.func @transform_3(%arg0: i32) -> (i32, i32) {
    %c0_i32 = arith.constant 0 : i32
    %c0_i32_0 = arith.constant 0 : i32
    return %arg0, %c0_i32 : i32, i32
  }
}

</mosaic_0001>

<llo_original>
// kernel: tpu_custom_call.1
$region0: #{tpu_custom_call.1}
  #allocation0 [shape = 'u32[]', space=smem, size = 0x4, offset = 0x4, fixed_abs, tag = 'smem constant byte address 0x4 - core index']
  #allocation1 [shape = 'u32[144,128]{1,0:T(1,128)}', space=vmem, size = 0x12000, scoped, tag = 'internal scratch']
  #allocation2 [shape = 'f32[1]{0:T(128)S(6)}', space=smem, size = 0x200, scoped, tag = 'scoped memory for tpu_custom_call.1']
  %s0 = inlined_call_operand.vmem [shape: f32[8,32], index: 0, kind: input, shape index: {}]
  %s1 = inlined_call_operand.vmem [shape: f32[32,1], index: 1, kind: input, shape index: {}]
  %s2 = inlined_call_operand.<no memory space> [shape: f32[1], index: 2, kind: input, shape index: {}]
  %s3 = inlined_call_operand.vmem [shape: f32[8,1], index: 3, kind: output, shape index: {}]
  %s4 = sld [smem:[#allocation0]]
  $region22: #{tpu_custom_call.1} parent=0
    _
  %s6 = ssub.s32 1, %s4
  %s7 = scalar_select 0, %s6, %s4
  %8 = sst [smem:[#allocation2]] %s2
  // Predicated region
  $region2: #{tpu_custom_call.1} parent=0 // pred_check
    _
  $region3: #{tpu_custom_call.1} parent=0 // pred_check_branch
    %10 = sbr.rel (0) target = $region5
  $region4: #{tpu_custom_call.1} parent=0 // pred_region
    _
  $region5: #{tpu_custom_call.1} parent=0 // pred_fallthru
    _
  // Predicated region
  $region6: #{tpu_custom_call.1} parent=0 // pred_check
    _
  $region7: #{tpu_custom_call.1} parent=0 // pred_check_branch
    %12 = sbr.rel (0) target = $region9
  $region8: #{tpu_custom_call.1} parent=0 // pred_region
    _
  $region9: #{tpu_custom_call.1} parent=0 // pred_fallthru
    _
  // Predicated region
  $region10: #{tpu_custom_call.1} parent=0 // pred_check
    _
  $region11: #{tpu_custom_call.1} parent=0 // pred_check_branch
    %14 = sbr.rel (0) target = $region13
  $region12: #{tpu_custom_call.1} parent=0 // pred_region
    _
  $region13: #{tpu_custom_call.1} parent=0 // pred_fallthru
    _
  %v15 = vld [vmem:[%s0] sm:$0xff]
  %v16 = vld [vmem:[%s1] sm:$0xff]
  %v17 = vld [vmem:[%s1 + $0x8] sm:$0xff]
  %v18 = vld [vmem:[%s1 + $0x10] sm:$0xff]
  %v19 = vld [vmem:[%s1 + $0x18] sm:$0xff]
  %s20 = sld [smem:[#allocation2]]
  %v21 = vstv %s20
  %vm22 = vcmask 261120
  %v24 = vsel %vm22, %v15, 0
  %26 = vmatprep.subr.mxu0 0.0
  %27 = vmatpush1.msra.mxu0 %v16
  %28 = vmatprep.subr.mxu0 0.0
  %29 = vmatpush1.msra.mxu0 %v17
  %30 = vmatprep.subr.mxu0 0.0
  %31 = vmatpush1.msra.mxu0 %v18
  %32 = vmatprep.subr.mxu0 0.0
  %33 = vmatpush1.msra.mxu0 %v19
  %34 = vmatprep.subr.mxu0 0.0
  %35 = vmatpush1.msra.mxu0 0.0
  %36 = vmatprep.subr.mxu0 0.0
  %37 = vmatpush1.msra.mxu0 0.0
  %38 = vmatprep.subr.mxu0 0.0
  %39 = vmatpush1.msra.mxu0 0.0
  %40 = vmatprep.subr.mxu0 0.0
  %41 = vmatpush1.msra.mxu0 0.0
  %42 = vmatprep.subr.mxu0 0.0
  %43 = vmatpush1.msra.mxu0 0.0
  %44 = vmatprep.subr.mxu0 0.0
  %45 = vmatpush1.msra.mxu0 0.0
  %46 = vmatprep.subr.mxu0 0.0
  %47 = vmatpush1.msra.mxu0 0.0
  %48 = vmatprep.subr.mxu0 0.0
  %49 = vmatpush1.msra.mxu0 0.0
  %50 = vmatprep.subr.mxu0 0.0
  %51 = vmatpush1.msra.mxu0 0.0
  %52 = vmatprep.subr.mxu0 0.0
  %53 = vmatpush1.msra.mxu0 0.0
  %54 = vmatprep.subr.mxu0 0.0
  %55 = vmatpush1.msra.mxu0 0.0
  %56 = vmatprep.subr.mxu0 0.0
  %57 = vmatpush1.msra.mxu0 0.0
  %58 = vmatprep.subr.mxu0 0.0
  %59 = vmatpush1.msra.mxu0 0.0
  %60 = vmatprep.subr.mxu0 0.0
  %61 = vmatpush1.msra.mxu0 0.0
  %62 = vmatprep.subr.mxu0 0.0
  %63 = vmatpush1.msra.mxu0 0.0
  %64 = vmatprep.subr.mxu0 0.0
  %65 = vmatpush1.msra.mxu0 0.0
  %66 = vmatprep.subr.mxu0 0.0
  %67 = vmatpush1.msra.mxu0 0.0
  %68 = vmatprep.subr.mxu0 0.0
  %69 = vmatpush1.msra.mxu0 0.0
  %70 = vmatprep.subr.mxu0 0.0
  %71 = vmatpush1.msra.mxu0 0.0
  %72 = vmatprep.subr.mxu0 0.0
  %73 = vmatpush1.msra.mxu0 0.0
  %74 = vmatprep.subr.mxu0 0.0
  %75 = vmatpush1.msra.mxu0 0.0
  %76 = vmatprep.subr.mxu0 0.0
  %77 = vmatpush1.msra.mxu0 0.0
  %78 = vmatprep.subr.mxu0 0.0
  %79 = vmatpush1.msra.mxu0 0.0
  %80 = vmatprep.subr.mxu0 0.0
  %81 = vmatpush1.msra.mxu0 0.0
  %82 = vmatprep.subr.mxu0 0.0
  %83 = vmatpush1.msra.mxu0 0.0
  %84 = vmatprep.subr.mxu0 0.0
  %85 = vmatpush1.msra.mxu0 0.0
  %86 = vmatprep.subr.mxu0 0.0
  %87 = vmatpush1.msra.mxu0 0.0
  %88 = vmatprep.subr.mxu0 0.0
  %89 = vmatpush1.msra.mxu0 0.0
  %90 = vmatprep.mubr.f32.mxu0 0.0
  %91 = vmatmul.mubr.f32.gmra.mrb[0].mxu0 %v24
  %v92 = vpop.f32.mrb[0].mxu0
  %v93 = vadd.f32 %v21, %v92
  %v94 = vpop.f32.mrb[0].mxu0
  %95 = vdwg.mxu0
  %v96 = vxor.u32 %v93, 2147483648
  %v97 = vmul.f32 %v96, 1.442695
  %v98 = vpow.pop %v97
  %v99 = vadd.f32 %v98, 1.0
  %v100 = vrcp.pop %v99
  %v101 = vmul.f32 1.0, %v100
  %vm102 = vcmask 7168
  %103 = vst.msk [vmem:[%s3] sm:$0xff] %vm102, %v101
  // Predicated region
  $region14: #{tpu_custom_call.1} parent=0 // pred_check
    _
  $region15: #{tpu_custom_call.1} parent=0 // pred_check_branch
    %105 = sbr.rel (0) target = $region17
  $region16: #{tpu_custom_call.1} parent=0 // pred_region
    _
  $region17: #{tpu_custom_call.1} parent=0 // pred_fallthru
    _
  // Predicated region
  $region18: #{tpu_custom_call.1} parent=0 // pred_check
    _
  $region19: #{tpu_custom_call.1} parent=0 // pred_check_branch
    %107 = sbr.rel (0) target = $region21
  $region20: #{tpu_custom_call.1} parent=0 // pred_region
    _
  $region21: #{tpu_custom_call.1} parent=0 // pred_fallthru
    _

</llo_original>
